<compile_context>
chip_gen: v6e
topology: v6e:2x2x1
jax: 0.10.0
libtpu: 0.0.40
codegen_flags: <defaults>
</compile_context>

<pallas_src>
import functools

import jax
import jax.numpy as jnp
from jax import lax
from jax.experimental import pallas as pl
from jax.experimental.pallas import tpu as pltpu

_LANES = 128
_SUBLANES = 8
_CHUNK_ROWS = 16          # inner-loop row chunk: keeps ~6 f32 vregs live
_MAX_BLOCK_ROWS = 1024    # 1024x128 f32 in+out double-buffered ~= 2 MiB VMEM


def wrc_kernel(w1_ref, b1_ref, w2_ref, b2_ref, x_ref, o_ref, *,
               n_hidden, block_rows, compute_dtype):
    """One lane-dense batch tile.

    w1_ref, b1_ref, w2_ref: (H,) f32 in SMEM  (hidden weight/bias, predict weight)
    b2_ref:                 (1,) f32 in SMEM  (predict bias)
    x_ref, o_ref:           (block_rows, 128) f32 in VMEM (batch on sublanes+lanes)
    """
    n_chunks = block_rows // _CHUNK_ROWS

    def body(c, carry):
        r0 = pl.multiple_of(c * _CHUNK_ROWS, _CHUNK_ROWS)
        x = x_ref[pl.ds(r0, _CHUNK_ROWS), :]                 # (16, 128) f32
        xc = x.astype(compute_dtype)
        acc = jnp.zeros(x.shape, jnp.float32)
        # out = sigmoid( sum_j w2[j] * tanh(w1[j] * x + b1[j]) + b2 )
        # Scalars come from SMEM, tanh uses the EUP, the reduction over H is a
        # plain VPU accumulate in f32 -- the MXU is never touched.
        for j in range(n_hidden):                            # small static H -> unroll
            w1j = w1_ref[j].astype(compute_dtype)
            b1j = b1_ref[j].astype(compute_dtype)
            h = jnp.tanh(w1j * xc + b1j)
            acc = acc + w2_ref[j] * h.astype(jnp.float32)
        o_ref[pl.ds(r0, _CHUNK_ROWS), :] = jax.nn.sigmoid(
            acc + b2_ref[0]).astype(o_ref.dtype)
        return carry

    lax.fori_loop(0, n_chunks, body, 0, unroll=False)


def _round_up(a, b):
    return -(-a // b) * b


def _num_tensorcores():
    """Best-effort TensorCore count (>=2 on v7x); falls back to 1."""
    try:
        info = pltpu.get_tpu_info()
    except Exception:
        return 1
    for name in ("num_cores", "cores_per_chip", "num_tensorcores",
                 "tensorcores_per_chip"):
        v = getattr(info, name, None)
        if isinstance(v, int) and v > 0:
            return v
    return 1


def wrc_net(x, w_hidden, b_hidden, w_predict, b_predict, *, use_bf16=False):
    """Forward pass of WRCNet.

    x:         (N, 1) f32  -- pressure-head samples (PyTorch Linear layout)
    w_hidden:  (H, 1) f32  -- hidden.weight
    b_hidden:  (H,)   f32  -- hidden.bias
    w_predict: (1, H) f32  -- predict.weight
    b_predict: (1,)   f32  -- predict.bias
    returns    (N, 1) f32
    """
    N = x.shape[0]
    H = w_hidden.shape[0]

    # Flatten parameters to 1-D scalar arrays for SMEM residency.
    w1 = w_hidden.reshape(H).astype(jnp.float32)
    b1 = b_hidden.reshape(H).astype(jnp.float32)
    w2 = w_predict.reshape(H).astype(jnp.float32)
    b2 = b_predict.reshape(1).astype(jnp.float32)

    # Lane-dense layout: view the batch as (rows, 128); pad rows up to a clean
    # multiple of the chosen tile so any N keeps big tiles (no divisor search).
    rows = -(-N // _LANES)
    if rows <= _MAX_BLOCK_ROWS:
        block_rows = _round_up(rows, _CHUNK_ROWS)
        steps = 1
    else:
        block_rows = _MAX_BLOCK_ROWS
        steps = -(-rows // block_rows)
        # v7x: keep the step count even so "parallel" splits evenly over 2 TCs.
        if steps >= 2 and steps % 2 == 1 and _num_tensorcores() >= 2:
            steps += 1
    padded_rows = steps * block_rows
    padded = padded_rows * _LANES

    x_flat = x.reshape(N).astype(jnp.float32)
    if padded != N:
        # TODO(synk): handle the ragged tail in-kernel (masked store on the
        # last tile) to avoid this extra HBM pad pass + output slice pass.
        x_flat = jnp.pad(x_flat, (0, padded - N))
    x2 = x_flat.reshape(padded_rows, _LANES)

    compute_dtype = jnp.bfloat16 if use_bf16 else jnp.float32

    out2 = pl.pallas_call(
        functools.partial(wrc_kernel, n_hidden=H, block_rows=block_rows,
                          compute_dtype=compute_dtype),
        out_shape=jax.ShapeDtypeStruct((padded_rows, _LANES), jnp.float32),
        grid_spec=pltpu.PrefetchScalarGridSpec(
            num_scalar_prefetch=0,
            grid=(steps,),
            in_specs=[
                pl.BlockSpec(memory_space=pltpu.MemorySpace.SMEM),     # w1 (H,)
                pl.BlockSpec(memory_space=pltpu.MemorySpace.SMEM),     # b1 (H,)
                pl.BlockSpec(memory_space=pltpu.MemorySpace.SMEM),     # w2 (H,)
                pl.BlockSpec(memory_space=pltpu.MemorySpace.SMEM),     # b2 (1,)
                pl.BlockSpec((block_rows, _LANES), lambda i: (i, 0)),  # x tile
            ],
            out_specs=pl.BlockSpec((block_rows, _LANES), lambda i: (i, 0)),
        ),
        compiler_params=pltpu.CompilerParams(
            dimension_semantics=("parallel",)),
    )(w1, b1, w2, b2, x2)

    out = out2.reshape(padded, 1)
    return out if padded == N else out[:N]


def init_params(key, n_hidden_neurons):
    """Parameter init mirroring the module (xavier-normal weights,
    PyTorch-default uniform biases), in PyTorch layouts."""
    H = n_hidden_neurons
    k1, k2, k3, k4 = jax.random.split(key, 4)
    std1 = (2.0 / (1 + H)) ** 0.5
    std2 = (2.0 / (H + 1)) ** 0.5
    w_hidden = std1 * jax.random.normal(k1, (H, 1), jnp.float32)    # hidden.weight
    w_predict = std2 * jax.random.normal(k2, (1, H), jnp.float32)   # predict.weight
    b_hidden = jax.random.uniform(k3, (H,), jnp.float32, -1.0, 1.0)            # fan_in=1
    bound2 = 1.0 / (H ** 0.5)
    b_predict = jax.random.uniform(k4, (1,), jnp.float32, -bound2, bound2)     # fan_in=H
    return w_hidden, b_hidden, w_predict, b_predict


def reference_forward(x, w_hidden, b_hidden, w_predict, b_predict):
    h = jnp.tanh(x @ w_hidden.T + b_hidden[None, :])
    return jax.nn.sigmoid(h @ w_predict.T + b_predict[None, :])


if __name__ == "__main__":
    key = jax.random.PRNGKey(0)
    kx, kp, kx2 = jax.random.split(key, 3)

    H = 32                 # n_hidden_neurons
    params = init_params(kp, H)

    # Main check: N a clean multiple of 16*128 -> no padding, no output slice.
    N = 2048
    x = jax.random.normal(kx, (N, 1), jnp.float32)
    out = jax.block_until_ready(wrc_net(x, *params))
    ref = reference_forward(x, *params)
    assert out.shape == (N, 1)
    assert jnp.allclose(out, ref, atol=1e-5, rtol=1e-5), "mismatch vs reference (N=2048)"

    # Ragged check: N not a multiple of 128 (exercises wrapper-side padding).
    N2 = 333
    x2 = jax.random.normal(kx2, (N2, 1), jnp.float32)
    out2 = jax.block_until_ready(wrc_net(x2, *params))
    ref2 = reference_forward(x2, *params)
    assert out2.shape == (N2, 1)
    assert jnp.allclose(out2, ref2, atol=1e-5, rtol=1e-5), "mismatch vs reference (N=333)"

    # bf16 transcendental fast path (v6e/v7x ~2x EUP; compiles on all gens).
    out_bf = jax.block_until_ready(wrc_net(x, *params, use_bf16=True))
    assert out_bf.shape == (N, 1)
    assert jnp.allclose(out_bf, ref, atol=3e-2, rtol=0.0), "mismatch vs reference (bf16)"

    print("KERNEL_OK")
</pallas_src>

<mosaic_0001>
module attributes {stable_mosaic.version = 11 : i64} {
  func.func @wrc_kernel(%arg0: i32, %arg1: memref<32xf32, #tpu.memory_space<smem>>, %arg2: memref<32xf32, #tpu.memory_space<smem>>, %arg3: memref<32xf32, #tpu.memory_space<smem>>, %arg4: memref<1xf32, #tpu.memory_space<smem>>, %arg5: memref<16x128xf32, #tpu.memory_space<vmem>>, %arg6: memref<16x128xf32, #tpu.memory_space<vmem>>) attributes {dimension_semantics = [#tpu.dimension_semantics<parallel>], iteration_bounds = array<i64: 1>, scalar_prefetch = 0 : i64, scratch_operands = 0 : i64, tpu.core_type = #tpu.core_type<tc>, window_params = [{transform_indices = @transform_0, window_bounds = array<i64: 32>}, {transform_indices = @transform_1, window_bounds = array<i64: 32>}, {transform_indices = @transform_2, window_bounds = array<i64: 32>}, {transform_indices = @transform_3, window_bounds = array<i64: 1>}, {transform_indices = @transform_4, window_bounds = array<i64: 16, 128>}, {transform_indices = @transform_5, window_bounds = array<i64: 16, 128>}]} {
    %c0_i32 = arith.constant 0 : i32
    %c16_i32 = arith.constant 16 : i32
    %0 = arith.muli %c0_i32, %c16_i32 : i32
    %1 = tpu.assume_multiple %0, 16 : i32
    %2 = arith.index_cast %1 : i32 to index
    %c0 = arith.constant 0 : index
    %3 = vector.load %arg5[%2, %c0] : memref<16x128xf32, #tpu.memory_space<vmem>>, vector<16x128xf32>
    %cst = arith.constant 0.000000e+00 : f32
    %4 = vector.broadcast %cst : f32 to vector<16x128xf32>
    %c0_0 = arith.constant 0 : index
    %5 = memref.load %arg1[%c0_0] : memref<32xf32, #tpu.memory_space<smem>>
    %c0_1 = arith.constant 0 : index
    %6 = memref.load %arg2[%c0_1] : memref<32xf32, #tpu.memory_space<smem>>
    %7 = vector.broadcast %5 : f32 to vector<16x128xf32>
    %8 = arith.mulf %7, %3 : vector<16x128xf32>
    %9 = vector.broadcast %6 : f32 to vector<16x128xf32>
    %10 = arith.addf %8, %9 : vector<16x128xf32>
    %11 = math.tanh %10 : vector<16x128xf32>
    %c0_2 = arith.constant 0 : index
    %12 = memref.load %arg3[%c0_2] : memref<32xf32, #tpu.memory_space<smem>>
    %13 = vector.broadcast %12 : f32 to vector<16x128xf32>
    %14 = arith.mulf %13, %11 : vector<16x128xf32>
    %15 = arith.addf %4, %14 : vector<16x128xf32>
    %c1 = arith.constant 1 : index
    %16 = memref.load %arg1[%c1] : memref<32xf32, #tpu.memory_space<smem>>
    %c1_3 = arith.constant 1 : index
    %17 = memref.load %arg2[%c1_3] : memref<32xf32, #tpu.memory_space<smem>>
    %18 = vector.broadcast %16 : f32 to vector<16x128xf32>
    %19 = arith.mulf %18, %3 : vector<16x128xf32>
    %20 = vector.broadcast %17 : f32 to vector<16x128xf32>
    %21 = arith.addf %19, %20 : vector<16x128xf32>
    %22 = math.tanh %21 : vector<16x128xf32>
    %c1_4 = arith.constant 1 : index
    %23 = memref.load %arg3[%c1_4] : memref<32xf32, #tpu.memory_space<smem>>
    %24 = vector.broadcast %23 : f32 to vector<16x128xf32>
    %25 = arith.mulf %24, %22 : vector<16x128xf32>
    %26 = arith.addf %15, %25 : vector<16x128xf32>
    %c2 = arith.constant 2 : index
    %27 = memref.load %arg1[%c2] : memref<32xf32, #tpu.memory_space<smem>>
    %c2_5 = arith.constant 2 : index
    %28 = memref.load %arg2[%c2_5] : memref<32xf32, #tpu.memory_space<smem>>
    %29 = vector.broadcast %27 : f32 to vector<16x128xf32>
    %30 = arith.mulf %29, %3 : vector<16x128xf32>
    %31 = vector.broadcast %28 : f32 to vector<16x128xf32>
    %32 = arith.addf %30, %31 : vector<16x128xf32>
    %33 = math.tanh %32 : vector<16x128xf32>
    %c2_6 = arith.constant 2 : index
    %34 = memref.load %arg3[%c2_6] : memref<32xf32, #tpu.memory_space<smem>>
    %35 = vector.broadcast %34 : f32 to vector<16x128xf32>
    %36 = arith.mulf %35, %33 : vector<16x128xf32>
    %37 = arith.addf %26, %36 : vector<16x128xf32>
    %c3 = arith.constant 3 : index
    %38 = memref.load %arg1[%c3] : memref<32xf32, #tpu.memory_space<smem>>
    %c3_7 = arith.constant 3 : index
    %39 = memref.load %arg2[%c3_7] : memref<32xf32, #tpu.memory_space<smem>>
    %40 = vector.broadcast %38 : f32 to vector<16x128xf32>
    %41 = arith.mulf %40, %3 : vector<16x128xf32>
    %42 = vector.broadcast %39 : f32 to vector<16x128xf32>
    %43 = arith.addf %41, %42 : vector<16x128xf32>
    %44 = math.tanh %43 : vector<16x128xf32>
    %c3_8 = arith.constant 3 : index
    %45 = memref.load %arg3[%c3_8] : memref<32xf32, #tpu.memory_space<smem>>
    %46 = vector.broadcast %45 : f32 to vector<16x128xf32>
    %47 = arith.mulf %46, %44 : vector<16x128xf32>
    %48 = arith.addf %37, %47 : vector<16x128xf32>
    %c4 = arith.constant 4 : index
    %49 = memref.load %arg1[%c4] : memref<32xf32, #tpu.memory_space<smem>>
    %c4_9 = arith.constant 4 : index
    %50 = memref.load %arg2[%c4_9] : memref<32xf32, #tpu.memory_space<smem>>
    %51 = vector.broadcast %49 : f32 to vector<16x128xf32>
    %52 = arith.mulf %51, %3 : vector<16x128xf32>
    %53 = vector.broadcast %50 : f32 to vector<16x128xf32>
    %54 = arith.addf %52, %53 : vector<16x128xf32>
    %55 = math.tanh %54 : vector<16x128xf32>
    %c4_10 = arith.constant 4 : index
    %56 = memref.load %arg3[%c4_10] : memref<32xf32, #tpu.memory_space<smem>>
    %57 = vector.broadcast %56 : f32 to vector<16x128xf32>
    %58 = arith.mulf %57, %55 : vector<16x128xf32>
    %59 = arith.addf %48, %58 : vector<16x128xf32>
    %c5 = arith.constant 5 : index
    %60 = memref.load %arg1[%c5] : memref<32xf32, #tpu.memory_space<smem>>
    %c5_11 = arith.constant 5 : index
    %61 = memref.load %arg2[%c5_11] : memref<32xf32, #tpu.memory_space<smem>>
    %62 = vector.broadcast %60 : f32 to vector<16x128xf32>
    %63 = arith.mulf %62, %3 : vector<16x128xf32>
    %64 = vector.broadcast %61 : f32 to vector<16x128xf32>
    %65 = arith.addf %63, %64 : vector<16x128xf32>
    %66 = math.tanh %65 : vector<16x128xf32>
    %c5_12 = arith.constant 5 : index
    %67 = memref.load %arg3[%c5_12] : memref<32xf32, #tpu.memory_space<smem>>
    %68 = vector.broadcast %67 : f32 to vector<16x128xf32>
    %69 = arith.mulf %68, %66 : vector<16x128xf32>
    %70 = arith.addf %59, %69 : vector<16x128xf32>
    %c6 = arith.constant 6 : index
    %71 = memref.load %arg1[%c6] : memref<32xf32, #tpu.memory_space<smem>>
    %c6_13 = arith.constant 6 : index
    %72 = memref.load %arg2[%c6_13] : memref<32xf32, #tpu.memory_space<smem>>
    %73 = vector.broadcast %71 : f32 to vector<16x128xf32>
    %74 = arith.mulf %73, %3 : vector<16x128xf32>
    %75 = vector.broadcast %72 : f32 to vector<16x128xf32>
    %76 = arith.addf %74, %75 : vector<16x128xf32>
    %77 = math.tanh %76 : vector<16x128xf32>
    %c6_14 = arith.constant 6 : index
    %78 = memref.load %arg3[%c6_14] : memref<32xf32, #tpu.memory_space<smem>>
    %79 = vector.broadcast %78 : f32 to vector<16x128xf32>
    %80 = arith.mulf %79, %77 : vector<16x128xf32>
    %81 = arith.addf %70, %80 : vector<16x128xf32>
    %c7 = arith.constant 7 : index
    %82 = memref.load %arg1[%c7] : memref<32xf32, #tpu.memory_space<smem>>
    %c7_15 = arith.constant 7 : index
    %83 = memref.load %arg2[%c7_15] : memref<32xf32, #tpu.memory_space<smem>>
    %84 = vector.broadcast %82 : f32 to vector<16x128xf32>
    %85 = arith.mulf %84, %3 : vector<16x128xf32>
    %86 = vector.broadcast %83 : f32 to vector<16x128xf32>
    %87 = arith.addf %85, %86 : vector<16x128xf32>
    %88 = math.tanh %87 : vector<16x128xf32>
    %c7_16 = arith.constant 7 : index
    %89 = memref.load %arg3[%c7_16] : memref<32xf32, #tpu.memory_space<smem>>
    %90 = vector.broadcast %89 : f32 to vector<16x128xf32>
    %91 = arith.mulf %90, %88 : vector<16x128xf32>
    %92 = arith.addf %81, %91 : vector<16x128xf32>
    %c8 = arith.constant 8 : index
    %93 = memref.load %arg1[%c8] : memref<32xf32, #tpu.memory_space<smem>>
    %c8_17 = arith.constant 8 : index
    %94 = memref.load %arg2[%c8_17] : memref<32xf32, #tpu.memory_space<smem>>
    %95 = vector.broadcast %93 : f32 to vector<16x128xf32>
    %96 = arith.mulf %95, %3 : vector<16x128xf32>
    %97 = vector.broadcast %94 : f32 to vector<16x128xf32>
    %98 = arith.addf %96, %97 : vector<16x128xf32>
    %99 = math.tanh %98 : vector<16x128xf32>
    %c8_18 = arith.constant 8 : index
    %100 = memref.load %arg3[%c8_18] : memref<32xf32, #tpu.memory_space<smem>>
    %101 = vector.broadcast %100 : f32 to vector<16x128xf32>
    %102 = arith.mulf %101, %99 : vector<16x128xf32>
    %103 = arith.addf %92, %102 : vector<16x128xf32>
    %c9 = arith.constant 9 : index
    %104 = memref.load %arg1[%c9] : memref<32xf32, #tpu.memory_space<smem>>
    %c9_19 = arith.constant 9 : index
    %105 = memref.load %arg2[%c9_19] : memref<32xf32, #tpu.memory_space<smem>>
    %106 = vector.broadcast %104 : f32 to vector<16x128xf32>
    %107 = arith.mulf %106, %3 : vector<16x128xf32>
    %108 = vector.broadcast %105 : f32 to vector<16x128xf32>
    %109 = arith.addf %107, %108 : vector<16x128xf32>
    %110 = math.tanh %109 : vector<16x128xf32>
    %c9_20 = arith.constant 9 : index
    %111 = memref.load %arg3[%c9_20] : memref<32xf32, #tpu.memory_space<smem>>
    %112 = vector.broadcast %111 : f32 to vector<16x128xf32>
    %113 = arith.mulf %112, %110 : vector<16x128xf32>
    %114 = arith.addf %103, %113 : vector<16x128xf32>
    %c10 = arith.constant 10 : index
    %115 = memref.load %arg1[%c10] : memref<32xf32, #tpu.memory_space<smem>>
    %c10_21 = arith.constant 10 : index
    %116 = memref.load %arg2[%c10_21] : memref<32xf32, #tpu.memory_space<smem>>
    %117 = vector.broadcast %115 : f32 to vector<16x128xf32>
    %118 = arith.mulf %117, %3 : vector<16x128xf32>
    %119 = vector.broadcast %116 : f32 to vector<16x128xf32>
    %120 = arith.addf %118, %119 : vector<16x128xf32>
    %121 = math.tanh %120 : vector<16x128xf32>
    %c10_22 = arith.constant 10 : index
    %122 = memref.load %arg3[%c10_22] : memref<32xf32, #tpu.memory_space<smem>>
    %123 = vector.broadcast %122 : f32 to vector<16x128xf32>
    %124 = arith.mulf %123, %121 : vector<16x128xf32>
    %125 = arith.addf %114, %124 : vector<16x128xf32>
    %c11 = arith.constant 11 : index
    %126 = memref.load %arg1[%c11] : memref<32xf32, #tpu.memory_space<smem>>
    %c11_23 = arith.constant 11 : index
    %127 = memref.load %arg2[%c11_23] : memref<32xf32, #tpu.memory_space<smem>>
    %128 = vector.broadcast %126 : f32 to vector<16x128xf32>
    %129 = arith.mulf %128, %3 : vector<16x128xf32>
    %130 = vector.broadcast %127 : f32 to vector<16x128xf32>
    %131 = arith.addf %129, %130 : vector<16x128xf32>
    %132 = math.tanh %131 : vector<16x128xf32>
    %c11_24 = arith.constant 11 : index
    %133 = memref.load %arg3[%c11_24] : memref<32xf32, #tpu.memory_space<smem>>
    %134 = vector.broadcast %133 : f32 to vector<16x128xf32>
    %135 = arith.mulf %134, %132 : vector<16x128xf32>
    %136 = arith.addf %125, %135 : vector<16x128xf32>
    %c12 = arith.constant 12 : index
    %137 = memref.load %arg1[%c12] : memref<32xf32, #tpu.memory_space<smem>>
    %c12_25 = arith.constant 12 : index
    %138 = memref.load %arg2[%c12_25] : memref<32xf32, #tpu.memory_space<smem>>
    %139 = vector.broadcast %137 : f32 to vector<16x128xf32>
    %140 = arith.mulf %139, %3 : vector<16x128xf32>
    %141 = vector.broadcast %138 : f32 to vector<16x128xf32>
    %142 = arith.addf %140, %141 : vector<16x128xf32>
    %143 = math.tanh %142 : vector<16x128xf32>
    %c12_26 = arith.constant 12 : index
    %144 = memref.load %arg3[%c12_26] : memref<32xf32, #tpu.memory_space<smem>>
    %145 = vector.broadcast %144 : f32 to vector<16x128xf32>
    %146 = arith.mulf %145, %143 : vector<16x128xf32>
    %147 = arith.addf %136, %146 : vector<16x128xf32>
    %c13 = arith.constant 13 : index
    %148 = memref.load %arg1[%c13] : memref<32xf32, #tpu.memory_space<smem>>
    %c13_27 = arith.constant 13 : index
    %149 = memref.load %arg2[%c13_27] : memref<32xf32, #tpu.memory_space<smem>>
    %150 = vector.broadcast %148 : f32 to vector<16x128xf32>
    %151 = arith.mulf %150, %3 : vector<16x128xf32>
    %152 = vector.broadcast %149 : f32 to vector<16x128xf32>
    %153 = arith.addf %151, %152 : vector<16x128xf32>
    %154 = math.tanh %153 : vector<16x128xf32>
    %c13_28 = arith.constant 13 : index
    %155 = memref.load %arg3[%c13_28] : memref<32xf32, #tpu.memory_space<smem>>
    %156 = vector.broadcast %155 : f32 to vector<16x128xf32>
    %157 = arith.mulf %156, %154 : vector<16x128xf32>
    %158 = arith.addf %147, %157 : vector<16x128xf32>
    %c14 = arith.constant 14 : index
    %159 = memref.load %arg1[%c14] : memref<32xf32, #tpu.memory_space<smem>>
    %c14_29 = arith.constant 14 : index
    %160 = memref.load %arg2[%c14_29] : memref<32xf32, #tpu.memory_space<smem>>
    %161 = vector.broadcast %159 : f32 to vector<16x128xf32>
    %162 = arith.mulf %161, %3 : vector<16x128xf32>
    %163 = vector.broadcast %160 : f32 to vector<16x128xf32>
    %164 = arith.addf %162, %163 : vector<16x128xf32>
    %165 = math.tanh %164 : vector<16x128xf32>
    %c14_30 = arith.constant 14 : index
    %166 = memref.load %arg3[%c14_30] : memref<32xf32, #tpu.memory_space<smem>>
    %167 = vector.broadcast %166 : f32 to vector<16x128xf32>
    %168 = arith.mulf %167, %165 : vector<16x128xf32>
    %169 = arith.addf %158, %168 : vector<16x128xf32>
    %c15 = arith.constant 15 : index
    %170 = memref.load %arg1[%c15] : memref<32xf32, #tpu.memory_space<smem>>
    %c15_31 = arith.constant 15 : index
    %171 = memref.load %arg2[%c15_31] : memref<32xf32, #tpu.memory_space<smem>>
    %172 = vector.broadcast %170 : f32 to vector<16x128xf32>
    %173 = arith.mulf %172, %3 : vector<16x128xf32>
    %174 = vector.broadcast %171 : f32 to vector<16x128xf32>
    %175 = arith.addf %173, %174 : vector<16x128xf32>
    %176 = math.tanh %175 : vector<16x128xf32>
    %c15_32 = arith.constant 15 : index
    %177 = memref.load %arg3[%c15_32] : memref<32xf32, #tpu.memory_space<smem>>
    %178 = vector.broadcast %177 : f32 to vector<16x128xf32>
    %179 = arith.mulf %178, %176 : vector<16x128xf32>
    %180 = arith.addf %169, %179 : vector<16x128xf32>
    %c16 = arith.constant 16 : index
    %181 = memref.load %arg1[%c16] : memref<32xf32, #tpu.memory_space<smem>>
    %c16_33 = arith.constant 16 : index
    %182 = memref.load %arg2[%c16_33] : memref<32xf32, #tpu.memory_space<smem>>
    %183 = vector.broadcast %181 : f32 to vector<16x128xf32>
    %184 = arith.mulf %183, %3 : vector<16x128xf32>
    %185 = vector.broadcast %182 : f32 to vector<16x128xf32>
    %186 = arith.addf %184, %185 : vector<16x128xf32>
    %187 = math.tanh %186 : vector<16x128xf32>
    %c16_34 = arith.constant 16 : index
    %188 = memref.load %arg3[%c16_34] : memref<32xf32, #tpu.memory_space<smem>>
    %189 = vector.broadcast %188 : f32 to vector<16x128xf32>
    %190 = arith.mulf %189, %187 : vector<16x128xf32>
    %191 = arith.addf %180, %190 : vector<16x128xf32>
    %c17 = arith.constant 17 : index
    %192 = memref.load %arg1[%c17] : memref<32xf32, #tpu.memory_space<smem>>
    %c17_35 = arith.constant 17 : index
    %193 = memref.load %arg2[%c17_35] : memref<32xf32, #tpu.memory_space<smem>>
    %194 = vector.broadcast %192 : f32 to vector<16x128xf32>
    %195 = arith.mulf %194, %3 : vector<16x128xf32>
    %196 = vector.broadcast %193 : f32 to vector<16x128xf32>
    %197 = arith.addf %195, %196 : vector<16x128xf32>
    %198 = math.tanh %197 : vector<16x128xf32>
    %c17_36 = arith.constant 17 : index
    %199 = memref.load %arg3[%c17_36] : memref<32xf32, #tpu.memory_space<smem>>
    %200 = vector.broadcast %199 : f32 to vector<16x128xf32>
    %201 = arith.mulf %200, %198 : vector<16x128xf32>
    %202 = arith.addf %191, %201 : vector<16x128xf32>
    %c18 = arith.constant 18 : index
    %203 = memref.load %arg1[%c18] : memref<32xf32, #tpu.memory_space<smem>>
    %c18_37 = arith.constant 18 : index
    %204 = memref.load %arg2[%c18_37] : memref<32xf32, #tpu.memory_space<smem>>
    %205 = vector.broadcast %203 : f32 to vector<16x128xf32>
    %206 = arith.mulf %205, %3 : vector<16x128xf32>
    %207 = vector.broadcast %204 : f32 to vector<16x128xf32>
    %208 = arith.addf %206, %207 : vector<16x128xf32>
    %209 = math.tanh %208 : vector<16x128xf32>
    %c18_38 = arith.constant 18 : index
    %210 = memref.load %arg3[%c18_38] : memref<32xf32, #tpu.memory_space<smem>>
    %211 = vector.broadcast %210 : f32 to vector<16x128xf32>
    %212 = arith.mulf %211, %209 : vector<16x128xf32>
    %213 = arith.addf %202, %212 : vector<16x128xf32>
    %c19 = arith.constant 19 : index
    %214 = memref.load %arg1[%c19] : memref<32xf32, #tpu.memory_space<smem>>
    %c19_39 = arith.constant 19 : index
    %215 = memref.load %arg2[%c19_39] : memref<32xf32, #tpu.memory_space<smem>>
    %216 = vector.broadcast %214 : f32 to vector<16x128xf32>
    %217 = arith.mulf %216, %3 : vector<16x128xf32>
    %218 = vector.broadcast %215 : f32 to vector<16x128xf32>
    %219 = arith.addf %217, %218 : vector<16x128xf32>
    %220 = math.tanh %219 : vector<16x128xf32>
    %c19_40 = arith.constant 19 : index
    %221 = memref.load %arg3[%c19_40] : memref<32xf32, #tpu.memory_space<smem>>
    %222 = vector.broadcast %221 : f32 to vector<16x128xf32>
    %223 = arith.mulf %222, %220 : vector<16x128xf32>
    %224 = arith.addf %213, %223 : vector<16x128xf32>
    %c20 = arith.constant 20 : index
    %225 = memref.load %arg1[%c20] : memref<32xf32, #tpu.memory_space<smem>>
    %c20_41 = arith.constant 20 : index
    %226 = memref.load %arg2[%c20_41] : memref<32xf32, #tpu.memory_space<smem>>
    %227 = vector.broadcast %225 : f32 to vector<16x128xf32>
    %228 = arith.mulf %227, %3 : vector<16x128xf32>
    %229 = vector.broadcast %226 : f32 to vector<16x128xf32>
    %230 = arith.addf %228, %229 : vector<16x128xf32>
    %231 = math.tanh %230 : vector<16x128xf32>
    %c20_42 = arith.constant 20 : index
    %232 = memref.load %arg3[%c20_42] : memref<32xf32, #tpu.memory_space<smem>>
    %233 = vector.broadcast %232 : f32 to vector<16x128xf32>
    %234 = arith.mulf %233, %231 : vector<16x128xf32>
    %235 = arith.addf %224, %234 : vector<16x128xf32>
    %c21 = arith.constant 21 : index
    %236 = memref.load %arg1[%c21] : memref<32xf32, #tpu.memory_space<smem>>
    %c21_43 = arith.constant 21 : index
    %237 = memref.load %arg2[%c21_43] : memref<32xf32, #tpu.memory_space<smem>>
    %238 = vector.broadcast %236 : f32 to vector<16x128xf32>
    %239 = arith.mulf %238, %3 : vector<16x128xf32>
    %240 = vector.broadcast %237 : f32 to vector<16x128xf32>
    %241 = arith.addf %239, %240 : vector<16x128xf32>
    %242 = math.tanh %241 : vector<16x128xf32>
    %c21_44 = arith.constant 21 : index
    %243 = memref.load %arg3[%c21_44] : memref<32xf32, #tpu.memory_space<smem>>
    %244 = vector.broadcast %243 : f32 to vector<16x128xf32>
    %245 = arith.mulf %244, %242 : vector<16x128xf32>
    %246 = arith.addf %235, %245 : vector<16x128xf32>
    %c22 = arith.constant 22 : index
    %247 = memref.load %arg1[%c22] : memref<32xf32, #tpu.memory_space<smem>>
    %c22_45 = arith.constant 22 : index
    %248 = memref.load %arg2[%c22_45] : memref<32xf32, #tpu.memory_space<smem>>
    %249 = vector.broadcast %247 : f32 to vector<16x128xf32>
    %250 = arith.mulf %249, %3 : vector<16x128xf32>
    %251 = vector.broadcast %248 : f32 to vector<16x128xf32>
    %252 = arith.addf %250, %251 : vector<16x128xf32>
    %253 = math.tanh %252 : vector<16x128xf32>
    %c22_46 = arith.constant 22 : index
    %254 = memref.load %arg3[%c22_46] : memref<32xf32, #tpu.memory_space<smem>>
    %255 = vector.broadcast %254 : f32 to vector<16x128xf32>
    %256 = arith.mulf %255, %253 : vector<16x128xf32>
    %257 = arith.addf %246, %256 : vector<16x128xf32>
    %c23 = arith.constant 23 : index
    %258 = memref.load %arg1[%c23] : memref<32xf32, #tpu.memory_space<smem>>
    %c23_47 = arith.constant 23 : index
    %259 = memref.load %arg2[%c23_47] : memref<32xf32, #tpu.memory_space<smem>>
    %260 = vector.broadcast %258 : f32 to vector<16x128xf32>
    %261 = arith.mulf %260, %3 : vector<16x128xf32>
    %262 = vector.broadcast %259 : f32 to vector<16x128xf32>
    %263 = arith.addf %261, %262 : vector<16x128xf32>
    %264 = math.tanh %263 : vector<16x128xf32>
    %c23_48 = arith.constant 23 : index
    %265 = memref.load %arg3[%c23_48] : memref<32xf32, #tpu.memory_space<smem>>
    %266 = vector.broadcast %265 : f32 to vector<16x128xf32>
    %267 = arith.mulf %266, %264 : vector<16x128xf32>
    %268 = arith.addf %257, %267 : vector<16x128xf32>
    %c24 = arith.constant 24 : index
    %269 = memref.load %arg1[%c24] : memref<32xf32, #tpu.memory_space<smem>>
    %c24_49 = arith.constant 24 : index
    %270 = memref.load %arg2[%c24_49] : memref<32xf32, #tpu.memory_space<smem>>
    %271 = vector.broadcast %269 : f32 to vector<16x128xf32>
    %272 = arith.mulf %271, %3 : vector<16x128xf32>
    %273 = vector.broadcast %270 : f32 to vector<16x128xf32>
    %274 = arith.addf %272, %273 : vector<16x128xf32>
    %275 = math.tanh %274 : vector<16x128xf32>
    %c24_50 = arith.constant 24 : index
    %276 = memref.load %arg3[%c24_50] : memref<32xf32, #tpu.memory_space<smem>>
    %277 = vector.broadcast %276 : f32 to vector<16x128xf32>
    %278 = arith.mulf %277, %275 : vector<16x128xf32>
    %279 = arith.addf %268, %278 : vector<16x128xf32>
    %c25 = arith.constant 25 : index
    %280 = memref.load %arg1[%c25] : memref<32xf32, #tpu.memory_space<smem>>
    %c25_51 = arith.constant 25 : index
    %281 = memref.load %arg2[%c25_51] : memref<32xf32, #tpu.memory_space<smem>>
    %282 = vector.broadcast %280 : f32 to vector<16x128xf32>
    %283 = arith.mulf %282, %3 : vector<16x128xf32>
    %284 = vector.broadcast %281 : f32 to vector<16x128xf32>
    %285 = arith.addf %283, %284 : vector<16x128xf32>
    %286 = math.tanh %285 : vector<16x128xf32>
    %c25_52 = arith.constant 25 : index
    %287 = memref.load %arg3[%c25_52] : memref<32xf32, #tpu.memory_space<smem>>
    %288 = vector.broadcast %287 : f32 to vector<16x128xf32>
    %289 = arith.mulf %288, %286 : vector<16x128xf32>
    %290 = arith.addf %279, %289 : vector<16x128xf32>
    %c26 = arith.constant 26 : index
    %291 = memref.load %arg1[%c26] : memref<32xf32, #tpu.memory_space<smem>>
    %c26_53 = arith.constant 26 : index
    %292 = memref.load %arg2[%c26_53] : memref<32xf32, #tpu.memory_space<smem>>
    %293 = vector.broadcast %291 : f32 to vector<16x128xf32>
    %294 = arith.mulf %293, %3 : vector<16x128xf32>
    %295 = vector.broadcast %292 : f32 to vector<16x128xf32>
    %296 = arith.addf %294, %295 : vector<16x128xf32>
    %297 = math.tanh %296 : vector<16x128xf32>
    %c26_54 = arith.constant 26 : index
    %298 = memref.load %arg3[%c26_54] : memref<32xf32, #tpu.memory_space<smem>>
    %299 = vector.broadcast %298 : f32 to vector<16x128xf32>
    %300 = arith.mulf %299, %297 : vector<16x128xf32>
    %301 = arith.addf %290, %300 : vector<16x128xf32>
    %c27 = arith.constant 27 : index
    %302 = memref.load %arg1[%c27] : memref<32xf32, #tpu.memory_space<smem>>
    %c27_55 = arith.constant 27 : index
    %303 = memref.load %arg2[%c27_55] : memref<32xf32, #tpu.memory_space<smem>>
    %304 = vector.broadcast %302 : f32 to vector<16x128xf32>
    %305 = arith.mulf %304, %3 : vector<16x128xf32>
    %306 = vector.broadcast %303 : f32 to vector<16x128xf32>
    %307 = arith.addf %305, %306 : vector<16x128xf32>
    %308 = math.tanh %307 : vector<16x128xf32>
    %c27_56 = arith.constant 27 : index
    %309 = memref.load %arg3[%c27_56] : memref<32xf32, #tpu.memory_space<smem>>
    %310 = vector.broadcast %309 : f32 to vector<16x128xf32>
    %311 = arith.mulf %310, %308 : vector<16x128xf32>
    %312 = arith.addf %301, %311 : vector<16x128xf32>
    %c28 = arith.constant 28 : index
    %313 = memref.load %arg1[%c28] : memref<32xf32, #tpu.memory_space<smem>>
    %c28_57 = arith.constant 28 : index
    %314 = memref.load %arg2[%c28_57] : memref<32xf32, #tpu.memory_space<smem>>
    %315 = vector.broadcast %313 : f32 to vector<16x128xf32>
    %316 = arith.mulf %315, %3 : vector<16x128xf32>
    %317 = vector.broadcast %314 : f32 to vector<16x128xf32>
    %318 = arith.addf %316, %317 : vector<16x128xf32>
    %319 = math.tanh %318 : vector<16x128xf32>
    %c28_58 = arith.constant 28 : index
    %320 = memref.load %arg3[%c28_58] : memref<32xf32, #tpu.memory_space<smem>>
    %321 = vector.broadcast %320 : f32 to vector<16x128xf32>
    %322 = arith.mulf %321, %319 : vector<16x128xf32>
    %323 = arith.addf %312, %322 : vector<16x128xf32>
    %c29 = arith.constant 29 : index
    %324 = memref.load %arg1[%c29] : memref<32xf32, #tpu.memory_space<smem>>
    %c29_59 = arith.constant 29 : index
    %325 = memref.load %arg2[%c29_59] : memref<32xf32, #tpu.memory_space<smem>>
    %326 = vector.broadcast %324 : f32 to vector<16x128xf32>
    %327 = arith.mulf %326, %3 : vector<16x128xf32>
    %328 = vector.broadcast %325 : f32 to vector<16x128xf32>
    %329 = arith.addf %327, %328 : vector<16x128xf32>
    %330 = math.tanh %329 : vector<16x128xf32>
    %c29_60 = arith.constant 29 : index
    %331 = memref.load %arg3[%c29_60] : memref<32xf32, #tpu.memory_space<smem>>
    %332 = vector.broadcast %331 : f32 to vector<16x128xf32>
    %333 = arith.mulf %332, %330 : vector<16x128xf32>
    %334 = arith.addf %323, %333 : vector<16x128xf32>
    %c30 = arith.constant 30 : index
    %335 = memref.load %arg1[%c30] : memref<32xf32, #tpu.memory_space<smem>>
    %c30_61 = arith.constant 30 : index
    %336 = memref.load %arg2[%c30_61] : memref<32xf32, #tpu.memory_space<smem>>
    %337 = vector.broadcast %335 : f32 to vector<16x128xf32>
    %338 = arith.mulf %337, %3 : vector<16x128xf32>
    %339 = vector.broadcast %336 : f32 to vector<16x128xf32>
    %340 = arith.addf %338, %339 : vector<16x128xf32>
    %341 = math.tanh %340 : vector<16x128xf32>
    %c30_62 = arith.constant 30 : index
    %342 = memref.load %arg3[%c30_62] : memref<32xf32, #tpu.memory_space<smem>>
    %343 = vector.broadcast %342 : f32 to vector<16x128xf32>
    %344 = arith.mulf %343, %341 : vector<16x128xf32>
    %345 = arith.addf %334, %344 : vector<16x128xf32>
    %c31 = arith.constant 31 : index
    %346 = memref.load %arg1[%c31] : memref<32xf32, #tpu.memory_space<smem>>
    %c31_63 = arith.constant 31 : index
    %347 = memref.load %arg2[%c31_63] : memref<32xf32, #tpu.memory_space<smem>>
    %348 = vector.broadcast %346 : f32 to vector<16x128xf32>
    %349 = arith.mulf %348, %3 : vector<16x128xf32>
    %350 = vector.broadcast %347 : f32 to vector<16x128xf32>
    %351 = arith.addf %349, %350 : vector<16x128xf32>
    %352 = math.tanh %351 : vector<16x128xf32>
    %c31_64 = arith.constant 31 : index
    %353 = memref.load %arg3[%c31_64] : memref<32xf32, #tpu.memory_space<smem>>
    %354 = vector.broadcast %353 : f32 to vector<16x128xf32>
    %355 = arith.mulf %354, %352 : vector<16x128xf32>
    %356 = arith.addf %345, %355 : vector<16x128xf32>
    %c0_65 = arith.constant 0 : index
    %357 = memref.load %arg4[%c0_65] : memref<1xf32, #tpu.memory_space<smem>>
    %358 = vector.broadcast %357 : f32 to vector<16x128xf32>
    %359 = arith.addf %356, %358 : vector<16x128xf32>
    %360 = arith.negf %359 : vector<16x128xf32>
    %361 = math.exp %360 : vector<16x128xf32>
    %cst_66 = arith.constant 1.000000e+00 : f32
    %362 = vector.broadcast %cst_66 : f32 to vector<16x128xf32>
    %363 = arith.addf %362, %361 : vector<16x128xf32>
    %364 = arith.divf %362, %363 : vector<16x128xf32>
    %365 = arith.index_cast %1 : i32 to index
    %c0_67 = arith.constant 0 : index
    %366 = vector.load %arg6[%365, %c0_67] : memref<16x128xf32, #tpu.memory_space<vmem>>, vector<16x128xf32>
    tpu.vector_store %arg6[%365, %c0_67], %364 {strides = array<i32>} : memref<16x128xf32, #tpu.memory_space<vmem>>, vector<16x128xf32>,
    %c1_i32 = arith.constant 1 : i32
    return
  }
  func.func @transform_0(%arg0: i32) -> i32 {
    %c0_i32 = arith.constant 0 : i32
    %c0_i32_0 = arith.constant 0 : i32
    return %c0_i32 : i32
  }
  func.func @transform_1(%arg0: i32) -> i32 {
    %c0_i32 = arith.constant 0 : i32
    %c0_i32_0 = arith.constant 0 : i32
    return %c0_i32 : i32
  }
  func.func @transform_2(%arg0: i32) -> i32 {
    %c0_i32 = arith.constant 0 : i32
    %c0_i32_0 = arith.constant 0 : i32
    return %c0_i32 : i32
  }
  func.func @transform_3(%arg0: i32) -> i32 {
    %c0_i32 = arith.constant 0 : i32
    %c0_i32_0 = arith.constant 0 : i32
    return %c0_i32 : i32
  }
  func.func @transform_4(%arg0: i32) -> (i32, i32) {
    %c0_i32 = arith.constant 0 : i32
    %c0_i32_0 = arith.constant 0 : i32
    return %arg0, %c0_i32 : i32, i32
  }
  func.func @transform_5(%arg0: i32) -> (i32, i32) {
    %c0_i32 = arith.constant 0 : i32
    %c0_i32_0 = arith.constant 0 : i32
    return %arg0, %c0_i32 : i32, i32
  }
}

</mosaic_0001>

<llo_original>
// kernel: tpu_custom_call.1
$region0: #{tpu_custom_call.1}
  #allocation0 [shape = 'u32[]', space=smem, size = 0x4, offset = 0x4, fixed_abs, tag = 'smem constant byte address 0x4 - core index']
  #allocation1 [shape = 'u32[144,128]{1,0:T(1,128)}', space=vmem, size = 0x12000, scoped, tag = 'internal scratch']
  #allocation2 [shape = 'f32[1]{0:T(128)S(6)}', space=smem, size = 0x200, scoped, tag = 'scoped memory for tpu_custom_call.1']
  %s0 = inlined_call_operand.vmem [shape: f32[32], index: 0, kind: input, shape index: {}]
  %s1 = inlined_call_operand.vmem [shape: f32[32], index: 1, kind: input, shape index: {}]
  %s2 = inlined_call_operand.vmem [shape: f32[32], index: 2, kind: input, shape index: {}]
  %s3 = inlined_call_operand.<no memory space> [shape: f32[1], index: 3, kind: input, shape index: {}]
  %s4 = inlined_call_operand.hbm [shape: f32[16,128], index: 4, kind: input, shape index: {}]
  %s5 = inlined_call_operand.hbm [shape: f32[16,128], index: 5, kind: output, shape index: {}]
  %s6 = sld [smem:[#allocation0]]
  $region46: #{tpu_custom_call.1} parent=0
    _
  %s8 = ssub.s32 1, %s6
  %s9 = scalar_select 0, %s8, %s6
  %10 = sst [smem:[#allocation2]] %s3
  $region1: #{tpu_custom_call.1} parent=0
    #allocation3 [shape = 'u8[512]{0}', space=smem, size = 0x200, scoped, tag = 'input window, operand 0, single buffered']
    #allocation4 [shape = 's32[1]{0}', space=sflag, size = 0x4, scoped, tag = 'scoped memory for tpu_custom_call.1']
    #allocation5 [shape = 's32[1]{0}', space=sflag, size = 0x4, scoped, tag = 'scoped memory for tpu_custom_call.1']
    #allocation6 [shape = 's32[1]{0}', space=sflag, size = 0x4, scoped, tag = 'scoped memory for tpu_custom_call.1']
    #allocation7 [shape = 'u8[512]{0}', space=smem, size = 0x200, scoped, tag = 'input window, operand 1, single buffered']
    #allocation8 [shape = 's32[1]{0}', space=sflag, size = 0x4, scoped, tag = 'scoped memory for tpu_custom_call.1']
    #allocation9 [shape = 'u8[512]{0}', space=smem, size = 0x200, scoped, tag = 'input window, operand 2, single buffered']
    #allocation10 [shape = 'u8[8192]{0}', space=vmem, size = 0x2000, scoped, tag = 'input window, operand 4, single buffered']
    #allocation11 [shape = 'u8[8192]{0}', space=vmem, size = 0x2000, scoped, tag = 'output window, operand 0, single buffered']
    %11 = vsyncpa [#allocation6], 0
    %12 = vsyncpa [#allocation8], 0
    %13 = vsyncpa [#allocation4], 0
    %14 = vsyncpa [#allocation5], 0
    // Predicated region
    $region2: #{tpu_custom_call.1} parent=1 // pred_check
      _
    $region3: #{tpu_custom_call.1} parent=1 // pred_check_branch
      %16 = sbr.rel (0) target = $region5
    $region4: #{tpu_custom_call.1} parent=1 // pred_region
      %s18 = ssub.s32 16, 16
      %19 = vsyncadd [#allocation6], %s18
      %s21 = sshll.u32 %s0, 4
      %s22 = int_to_ptr.vmem [resolvable:$true] %s21
      %24 = dma.vmem_to_smem %s22, 16, [#allocation3], [#allocation6]
    $region5: #{tpu_custom_call.1} parent=1 // pred_fallthru
      _
    // Predicated region
    $region6: #{tpu_custom_call.1} parent=1 // pred_check
      _
    $region7: #{tpu_custom_call.1} parent=1 // pred_check_branch
      %26 = sbr.rel (0) target = $region9
    $region8: #{tpu_custom_call.1} parent=1 // pred_region
      %s28 = ssub.s32 16, 16
      %29 = vsyncadd [#allocation8], %s28
      %s31 = sshll.u32 %s1, 4
      %s32 = int_to_ptr.vmem [resolvable:$true] %s31
      %34 = dma.vmem_to_smem %s32, 16, [#allocation7], [#allocation8]
    $region9: #{tpu_custom_call.1} parent=1 // pred_fallthru
      _
    // Predicated region
    $region10: #{tpu_custom_call.1} parent=1 // pred_check
      _
    $region11: #{tpu_custom_call.1} parent=1 // pred_check_branch
      %36 = sbr.rel (0) target = $region13
    $region12: #{tpu_custom_call.1} parent=1 // pred_region
      %s38 = ssub.s32 16, 16
      %39 = vsyncadd [#allocation8], %s38
      %s41 = sshll.u32 %s2, 4
      %s42 = int_to_ptr.vmem [resolvable:$true] %s41
      %44 = dma.vmem_to_smem %s42, 16, [#allocation9], [#allocation8]
    $region13: #{tpu_custom_call.1} parent=1 // pred_fallthru
      _
    // Predicated region
    $region14: #{tpu_custom_call.1} parent=1 // pred_check
      _
    $region15: #{tpu_custom_call.1} parent=1 // pred_check_branch
      %46 = sbr.rel (0) target = $region17
    $region16: #{tpu_custom_call.1} parent=1 // pred_region
      _
    $region17: #{tpu_custom_call.1} parent=1 // pred_fallthru
      _
    // Predicated region
    $region18: #{tpu_custom_call.1} parent=1 // pred_check
      _
    $region19: #{tpu_custom_call.1} parent=1 // pred_check_branch
      %48 = sbr.rel (0) target = $region21
    $region20: #{tpu_custom_call.1} parent=1 // pred_region
      %s50 = ssub.s32 256, 256
      %51 = vsyncadd [#allocation4], %s50
      %s52 = sshll.u32 [#allocation10], 4
      %s53 = int_to_ptr.vmem [resolvable:$true] %s52
      %58 = dma.hbm_to_vmem [thread:$0]  %s4, 256, %s53, [#allocation4], 128, 128, 8
    $region21: #{tpu_custom_call.1} parent=1 // pred_fallthru
      _
    // Predicated region
    $region22: #{tpu_custom_call.1} parent=1 // pred_check
      _
    $region23: #{tpu_custom_call.1} parent=1 // pred_check_branch
      %60 = sbr.rel (0) target = $region25
    $region24: #{tpu_custom_call.1} parent=1 // pred_region
      %61 = dma.done [#allocation6], 16
    $region25: #{tpu_custom_call.1} parent=1 // pred_fallthru
      _
    // Predicated region
    $region26: #{tpu_custom_call.1} parent=1 // pred_check
      _
    $region27: #{tpu_custom_call.1} parent=1 // pred_check_branch
      %63 = sbr.rel (0) target = $region29
    $region28: #{tpu_custom_call.1} parent=1 // pred_region
      %64 = dma.done [#allocation8], 16
    $region29: #{tpu_custom_call.1} parent=1 // pred_fallthru
      _
    // Predicated region
    $region30: #{tpu_custom_call.1} parent=1 // pred_check
      _
    $region31: #{tpu_custom_call.1} parent=1 // pred_check_branch
      %66 = sbr.rel (0) target = $region33
    $region32: #{tpu_custom_call.1} parent=1 // pred_region
      %67 = dma.done [#allocation8], 16
    $region33: #{tpu_custom_call.1} parent=1 // pred_fallthru
      _
    // Predicated region
    $region34: #{tpu_custom_call.1} parent=1 // pred_check
      _
    $region35: #{tpu_custom_call.1} parent=1 // pred_check_branch
      %69 = sbr.rel (0) target = $region37
    $region36: #{tpu_custom_call.1} parent=1 // pred_region
      %70 = dma.done [#allocation4], 256
    $region37: #{tpu_custom_call.1} parent=1 // pred_fallthru
      _
    %71 = sfence
    %v72 = vld [vmem:[#allocation10] sm:$0xff]
    %v73 = vld [vmem:[#allocation10 + $0x8] sm:$0xff]
    %s74 = sld [smem:[#allocation3]]
    %s75 = sld [smem:[#allocation7]]
    %v76 = vstv %s74
    %v77 = vmul.f32 %v76, %v72
    %v78 = vmul.f32 %v76, %v73
    %v79 = vstv %s75
    %v80 = vadd.f32 %v77, %v79
    %v81 = vadd.f32 %v78, %v79
    %v82 = vtanh.pop %v80
    %v83 = vtanh.pop %v81
    %s84 = sld [smem:[#allocation9]]
    %v85 = vstv %s84
    %v86 = vmul.f32 %v85, %v82
    %v87 = vmul.f32 %v85, %v83
    %v88 = vadd.f32 %v86, 0.0
    %v89 = vadd.f32 %v87, 0.0
    %s90 = sld [smem:[#allocation3 + $0x1]]
    %s91 = sld [smem:[#allocation7 + $0x1]]
    %v92 = vstv %s90
    %v93 = vmul.f32 %v92, %v72
    %v94 = vmul.f32 %v92, %v73
    %v95 = vstv %s91
    %v96 = vadd.f32 %v93, %v95
    %v97 = vadd.f32 %v94, %v95
    %v98 = vtanh.pop %v96
    %v99 = vtanh.pop %v97
    %s100 = sld [smem:[#allocation9 + $0x1]]
    %v101 = vstv %s100
    %v102 = vmul.f32 %v101, %v98
    %v103 = vmul.f32 %v101, %v99
    %v104 = vadd.f32 %v88, %v102
    %v105 = vadd.f32 %v89, %v103
    %s106 = sld [smem:[#allocation3 + $0x2]]
    %s107 = sld [smem:[#allocation7 + $0x2]]
    %v108 = vstv %s106
    %v109 = vmul.f32 %v108, %v72
    %v110 = vmul.f32 %v108, %v73
    %v111 = vstv %s107
    %v112 = vadd.f32 %v109, %v111
    %v113 = vadd.f32 %v110, %v111
    %v114 = vtanh.pop %v112
    %v115 = vtanh.pop %v113
    %s116 = sld [smem:[#allocation9 + $0x2]]
    %v117 = vstv %s116
    %v118 = vmul.f32 %v117, %v114
    %v119 = vmul.f32 %v117, %v115
    %v120 = vadd.f32 %v104, %v118
    %v121 = vadd.f32 %v105, %v119
    %s122 = sld [smem:[#allocation3 + $0x3]]
    %s123 = sld [smem:[#allocation7 + $0x3]]
    %v124 = vstv %s122
    %v125 = vmul.f32 %v124, %v72
    %v126 = vmul.f32 %v124, %v73
    %v127 = vstv %s123
    %v128 = vadd.f32 %v125, %v127
    %v129 = vadd.f32 %v126, %v127
    %v130 = vtanh.pop %v128
    %v131 = vtanh.pop %v129
    %s132 = sld [smem:[#allocation9 + $0x3]]
    %v133 = vstv %s132
    %v134 = vmul.f32 %v133, %v130
    %v135 = vmul.f32 %v133, %v131
    %v136 = vadd.f32 %v120, %v134
    %v137 = vadd.f32 %v121, %v135
    %s138 = sld [smem:[#allocation3 + $0x4]]
    %s139 = sld [smem:[#allocation7 + $0x4]]
    %v140 = vstv %s138
    %v141 = vmul.f32 %v140, %v72
    %v142 = vmul.f32 %v140, %v73
    %v143 = vstv %s139
    %v144 = vadd.f32 %v141, %v143
    %v145 = vadd.f32 %v142, %v143
    %v146 = vtanh.pop %v144
    %v147 = vtanh.pop %v145
    %s148 = sld [smem:[#allocation9 + $0x4]]
    %v149 = vstv %s148
    %v150 = vmul.f32 %v149, %v146
    %v151 = vmul.f32 %v149, %v147
    %v152 = vadd.f32 %v136, %v150
    %v153 = vadd.f32 %v137, %v151
    %s154 = sld [smem:[#allocation3 + $0x5]]
    %s155 = sld [smem:[#allocation7 + $0x5]]
    %v156 = vstv %s154
    %v157 = vmul.f32 %v156, %v72
    %v158 = vmul.f32 %v156, %v73
    %v159 = vstv %s155
    %v160 = vadd.f32 %v157, %v159
    %v161 = vadd.f32 %v158, %v159
    %v162 = vtanh.pop %v160
    %v163 = vtanh.pop %v161
    %s164 = sld [smem:[#allocation9 + $0x5]]
    %v165 = vstv %s164
    %v166 = vmul.f32 %v165, %v162
    %v167 = vmul.f32 %v165, %v163
    %v168 = vadd.f32 %v152, %v166
    %v169 = vadd.f32 %v153, %v167
    %s170 = sld [smem:[#allocation3 + $0x6]]
    %s171 = sld [smem:[#allocation7 + $0x6]]
    %v172 = vstv %s170
    %v173 = vmul.f32 %v172, %v72
    %v174 = vmul.f32 %v172, %v73
    %v175 = vstv %s171
    %v176 = vadd.f32 %v173, %v175
    %v177 = vadd.f32 %v174, %v175
    %v178 = vtanh.pop %v176
    %v179 = vtanh.pop %v177
    %s180 = sld [smem:[#allocation9 + $0x6]]
    %v181 = vstv %s180
    %v182 = vmul.f32 %v181, %v178
    %v183 = vmul.f32 %v181, %v179
    %v184 = vadd.f32 %v168, %v182
    %v185 = vadd.f32 %v169, %v183
    %s186 = sld [smem:[#allocation3 + $0x7]]
    %s187 = sld [smem:[#allocation7 + $0x7]]
    %v188 = vstv %s186
    %v189 = vmul.f32 %v188, %v72
    %v190 = vmul.f32 %v188, %v73
    %v191 = vstv %s187
    %v192 = vadd.f32 %v189, %v191
    %v193 = vadd.f32 %v190, %v191
    %v194 = vtanh.pop %v192
    %v195 = vtanh.pop %v193
    %s196 = sld [smem:[#allocation9 + $0x7]]
    %v197 = vstv %s196
    %v198 = vmul.f32 %v197, %v194
    %v199 = vmul.f32 %v197, %v195
    %v200 = vadd.f32 %v184, %v198
    %v201 = vadd.f32 %v185, %v199
    %s202 = sld [smem:[#allocation3 + $0x8]]
    %s203 = sld [smem:[#allocation7 + $0x8]]
    %v204 = vstv %s202
    %v205 = vmul.f32 %v204, %v72
    %v206 = vmul.f32 %v204, %v73
    %v207 = vstv %s203
    %v208 = vadd.f32 %v205, %v207
    %v209 = vadd.f32 %v206, %v207
    %v210 = vtanh.pop %v208
    %v211 = vtanh.pop %v209
    %s212 = sld [smem:[#allocation9 + $0x8]]
    %v213 = vstv %s212
    %v214 = vmul.f32 %v213, %v210
    %v215 = vmul.f32 %v213, %v211
    %v216 = vadd.f32 %v200, %v214
    %v217 = vadd.f32 %v201, %v215
    %s218 = sld [smem:[#allocation3 + $0x9]]
    %s219 = sld [smem:[#allocation7 + $0x9]]
    %v220 = vstv %s218
    %v221 = vmul.f32 %v220, %v72
    %v222 = vmul.f32 %v220, %v73
    %v223 = vstv %s219
    %v224 = vadd.f32 %v221, %v223
    %v225 = vadd.f32 %v222, %v223
    %v226 = vtanh.pop %v224
    %v227 = vtanh.pop %v225
    %s228 = sld [smem:[#allocation9 + $0x9]]
    %v229 = vstv %s228
    %v230 = vmul.f32 %v229, %v226
    %v231 = vmul.f32 %v229, %v227
    %v232 = vadd.f32 %v216, %v230
    %v233 = vadd.f32 %v217, %v231
    %s234 = sld [smem:[#allocation3 + $0xa]]
    %s235 = sld [smem:[#allocation7 + $0xa]]
    %v236 = vstv %s234
    %v237 = vmul.f32 %v236, %v72
    %v238 = vmul.f32 %v236, %v73
    %v239 = vstv %s235
    %v240 = vadd.f32 %v237, %v239
    %v241 = vadd.f32 %v238, %v239
    %v242 = vtanh.pop %v240
    %v243 = vtanh.pop %v241
    %s244 = sld [smem:[#allocation9 + $0xa]]
    %v245 = vstv %s244
    %v246 = vmul.f32 %v245, %v242
    %v247 = vmul.f32 %v245, %v243
    %v248 = vadd.f32 %v232, %v246
    %v249 = vadd.f32 %v233, %v247
    %s250 = sld [smem:[#allocation3 + $0xb]]
    %s251 = sld [smem:[#allocation7 + $0xb]]
    %v252 = vstv %s250
    %v253 = vmul.f32 %v252, %v72
    %v254 = vmul.f32 %v252, %v73
    %v255 = vstv %s251
    %v256 = vadd.f32 %v253, %v255
    %v257 = vadd.f32 %v254, %v255
    %v258 = vtanh.pop %v256
    %v259 = vtanh.pop %v257
    %s260 = sld [smem:[#allocation9 + $0xb]]
    %v261 = vstv %s260
    %v262 = vmul.f32 %v261, %v258
    %v263 = vmul.f32 %v261, %v259
    %v264 = vadd.f32 %v248, %v262
    %v265 = vadd.f32 %v249, %v263
    %s266 = sld [smem:[#allocation3 + $0xc]]
    %s267 = sld [smem:[#allocation7 + $0xc]]
    %v268 = vstv %s266
    %v269 = vmul.f32 %v268, %v72
    %v270 = vmul.f32 %v268, %v73
    %v271 = vstv %s267
    %v272 = vadd.f32 %v269, %v271
    %v273 = vadd.f32 %v270, %v271
    %v274 = vtanh.pop %v272
    %v275 = vtanh.pop %v273
    %s276 = sld [smem:[#allocation9 + $0xc]]
    %v277 = vstv %s276
    %v278 = vmul.f32 %v277, %v274
    %v279 = vmul.f32 %v277, %v275
    %v280 = vadd.f32 %v264, %v278
    %v281 = vadd.f32 %v265, %v279
    %s282 = sld [smem:[#allocation3 + $0xd]]
    %s283 = sld [smem:[#allocation7 + $0xd]]
    %v284 = vstv %s282
    %v285 = vmul.f32 %v284, %v72
    %v286 = vmul.f32 %v284, %v73
    %v287 = vstv %s283
    %v288 = vadd.f32 %v285, %v287
    %v289 = vadd.f32 %v286, %v287
    %v290 = vtanh.pop %v288
    %v291 = vtanh.pop %v289
    %s292 = sld [smem:[#allocation9 + $0xd]]
    %v293 = vstv %s292
    %v294 = vmul.f32 %v293, %v290
    %v295 = vmul.f32 %v293, %v291
    %v296 = vadd.f32 %v280, %v294
    %v297 = vadd.f32 %v281, %v295
    %s298 = sld [smem:[#allocation3 + $0xe]]
    %s299 = sld [smem:[#allocation7 + $0xe]]
    %v300 = vstv %s298
    %v301 = vmul.f32 %v300, %v72
    %v302 = vmul.f32 %v300, %v73
    %v303 = vstv %s299
    %v304 = vadd.f32 %v301, %v303
    %v305 = vadd.f32 %v302, %v303
    %v306 = vtanh.pop %v304
    %v307 = vtanh.pop %v305
    %s308 = sld [smem:[#allocation9 + $0xe]]
    %v309 = vstv %s308
    %v310 = vmul.f32 %v309, %v306
    %v311 = vmul.f32 %v309, %v307
    %v312 = vadd.f32 %v296, %v310
    %v313 = vadd.f32 %v297, %v311
    %s314 = sld [smem:[#allocation3 + $0xf]]
    %s315 = sld [smem:[#allocation7 + $0xf]]
    %v316 = vstv %s314
    %v317 = vmul.f32 %v316, %v72
    %v318 = vmul.f32 %v316, %v73
    %v319 = vstv %s315
    %v320 = vadd.f32 %v317, %v319
    %v321 = vadd.f32 %v318, %v319
    %v322 = vtanh.pop %v320
    %v323 = vtanh.pop %v321
    %s324 = sld [smem:[#allocation9 + $0xf]]
    %v325 = vstv %s324
    %v326 = vmul.f32 %v325, %v322
    %v327 = vmul.f32 %v325, %v323
    %v328 = vadd.f32 %v312, %v326
    %v329 = vadd.f32 %v313, %v327
    %s330 = sld [smem:[#allocation3 + $0x10]]
    %s331 = sld [smem:[#allocation7 + $0x10]]
    %v332 = vstv %s330
    %v333 = vmul.f32 %v332, %v72
    %v334 = vmul.f32 %v332, %v73
    %v335 = vstv %s331
    %v336 = vadd.f32 %v333, %v335
    %v337 = vadd.f32 %v334, %v335
    %v338 = vtanh.pop %v336
    %v339 = vtanh.pop %v337
    %s340 = sld [smem:[#allocation9 + $0x10]]
    %v341 = vstv %s340
    %v342 = vmul.f32 %v341, %v338
    %v343 = vmul.f32 %v341, %v339
    %v344 = vadd.f32 %v328, %v342
    %v345 = vadd.f32 %v329, %v343
    %s346 = sld [smem:[#allocation3 + $0x11]]
    %s347 = sld [smem:[#allocation7 + $0x11]]
    %v348 = vstv %s346
    %v349 = vmul.f32 %v348, %v72
    %v350 = vmul.f32 %v348, %v73
    %v351 = vstv %s347
    %v352 = vadd.f32 %v349, %v351
    %v353 = vadd.f32 %v350, %v351
    %v354 = vtanh.pop %v352
    %v355 = vtanh.pop %v353
    %s356 = sld [smem:[#allocation9 + $0x11]]
    %v357 = vstv %s356
    %v358 = vmul.f32 %v357, %v354
    %v359 = vmul.f32 %v357, %v355
    %v360 = vadd.f32 %v344, %v358
    %v361 = vadd.f32 %v345, %v359
    %s362 = sld [smem:[#allocation3 + $0x12]]
    %s363 = sld [smem:[#allocation7 + $0x12]]
    %v364 = vstv %s362
    %v365 = vmul.f32 %v364, %v72
    %v366 = vmul.f32 %v364, %v73
    %v367 = vstv %s363
    %v368 = vadd.f32 %v365, %v367
    %v369 = vadd.f32 %v366, %v367
    %v370 = vtanh.pop %v368
    %v371 = vtanh.pop %v369
    %s372 = sld [smem:[#allocation9 + $0x12]]
    %v373 = vstv %s372
    %v374 = vmul.f32 %v373, %v370
    %v375 = vmul.f32 %v373, %v371
    %v376 = vadd.f32 %v360, %v374
    %v377 = vadd.f32 %v361, %v375
    %s378 = sld [smem:[#allocation3 + $0x13]]
    %s379 = sld [smem:[#allocation7 + $0x13]]
    %v380 = vstv %s378
    %v381 = vmul.f32 %v380, %v72
    %v382 = vmul.f32 %v380, %v73
    %v383 = vstv %s379
    %v384 = vadd.f32 %v381, %v383
    %v385 = vadd.f32 %v382, %v383
    %v386 = vtanh.pop %v384
    %v387 = vtanh.pop %v385
    %s388 = sld [smem:[#allocation9 + $0x13]]
    %v389 = vstv %s388
    %v390 = vmul.f32 %v389, %v386
    %v391 = vmul.f32 %v389, %v387
    %v392 = vadd.f32 %v376, %v390
    %v393 = vadd.f32 %v377, %v391
    %s394 = sld [smem:[#allocation3 + $0x14]]
    %s395 = sld [smem:[#allocation7 + $0x14]]
    %v396 = vstv %s394
    %v397 = vmul.f32 %v396, %v72
    %v398 = vmul.f32 %v396, %v73
    %v399 = vstv %s395
    %v400 = vadd.f32 %v397, %v399
    %v401 = vadd.f32 %v398, %v399
    %v402 = vtanh.pop %v400
    %v403 = vtanh.pop %v401
    %s404 = sld [smem:[#allocation9 + $0x14]]
    %v405 = vstv %s404
    %v406 = vmul.f32 %v405, %v402
    %v407 = vmul.f32 %v405, %v403
    %v408 = vadd.f32 %v392, %v406
    %v409 = vadd.f32 %v393, %v407
    %s410 = sld [smem:[#allocation3 + $0x15]]
    %s411 = sld [smem:[#allocation7 + $0x15]]
    %v412 = vstv %s410
    %v413 = vmul.f32 %v412, %v72
    %v414 = vmul.f32 %v412, %v73
    %v415 = vstv %s411
    %v416 = vadd.f32 %v413, %v415
    %v417 = vadd.f32 %v414, %v415
    %v418 = vtanh.pop %v416
    %v419 = vtanh.pop %v417
    %s420 = sld [smem:[#allocation9 + $0x15]]
    %v421 = vstv %s420
    %v422 = vmul.f32 %v421, %v418
    %v423 = vmul.f32 %v421, %v419
    %v424 = vadd.f32 %v408, %v422
    %v425 = vadd.f32 %v409, %v423
    %s426 = sld [smem:[#allocation3 + $0x16]]
    %s427 = sld [smem:[#allocation7 + $0x16]]
    %v428 = vstv %s426
    %v429 = vmul.f32 %v428, %v72
    %v430 = vmul.f32 %v428, %v73
    %v431 = vstv %s427
    %v432 = vadd.f32 %v429, %v431
    %v433 = vadd.f32 %v430, %v431
    %v434 = vtanh.pop %v432
    %v435 = vtanh.pop %v433
    %s436 = sld [smem:[#allocation9 + $0x16]]
    %v437 = vstv %s436
    %v438 = vmul.f32 %v437, %v434
    %v439 = vmul.f32 %v437, %v435
    %v440 = vadd.f32 %v424, %v438
    %v441 = vadd.f32 %v425, %v439
    %s442 = sld [smem:[#allocation3 + $0x17]]
    %s443 = sld [smem:[#allocation7 + $0x17]]
    %v444 = vstv %s442
    %v445 = vmul.f32 %v444, %v72
    %v446 = vmul.f32 %v444, %v73
    %v447 = vstv %s443
    %v448 = vadd.f32 %v445, %v447
    %v449 = vadd.f32 %v446, %v447
    %v450 = vtanh.pop %v448
    %v451 = vtanh.pop %v449
    %s452 = sld [smem:[#allocation9 + $0x17]]
    %v453 = vstv %s452
    %v454 = vmul.f32 %v453, %v450
    %v455 = vmul.f32 %v453, %v451
    %v456 = vadd.f32 %v440, %v454
    %v457 = vadd.f32 %v441, %v455
    %s458 = sld [smem:[#allocation3 + $0x18]]
    %s459 = sld [smem:[#allocation7 + $0x18]]
    %v460 = vstv %s458
    %v461 = vmul.f32 %v460, %v72
    %v462 = vmul.f32 %v460, %v73
    %v463 = vstv %s459
    %v464 = vadd.f32 %v461, %v463
    %v465 = vadd.f32 %v462, %v463
    %v466 = vtanh.pop %v464
    %v467 = vtanh.pop %v465
    %s468 = sld [smem:[#allocation9 + $0x18]]
    %v469 = vstv %s468
    %v470 = vmul.f32 %v469, %v466
    %v471 = vmul.f32 %v469, %v467
    %v472 = vadd.f32 %v456, %v470
    %v473 = vadd.f32 %v457, %v471
    %s474 = sld [smem:[#allocation3 + $0x19]]
    %s475 = sld [smem:[#allocation7 + $0x19]]
    %v476 = vstv %s474
    %v477 = vmul.f32 %v476, %v72
    %v478 = vmul.f32 %v476, %v73
    %v479 = vstv %s475
    %v480 = vadd.f32 %v477, %v479
    %v481 = vadd.f32 %v478, %v479
    %v482 = vtanh.pop %v480
    %v483 = vtanh.pop %v481
    %s484 = sld [smem:[#allocation9 + $0x19]]
    %v485 = vstv %s484
    %v486 = vmul.f32 %v485, %v482
    %v487 = vmul.f32 %v485, %v483
    %v488 = vadd.f32 %v472, %v486
    %v489 = vadd.f32 %v473, %v487
    %s490 = sld [smem:[#allocation3 + $0x1a]]
    %s491 = sld [smem:[#allocation7 + $0x1a]]
    %v492 = vstv %s490
    %v493 = vmul.f32 %v492, %v72
    %v494 = vmul.f32 %v492, %v73
    %v495 = vstv %s491
    %v496 = vadd.f32 %v493, %v495
    %v497 = vadd.f32 %v494, %v495
    %v498 = vtanh.pop %v496
    %v499 = vtanh.pop %v497
    %s500 = sld [smem:[#allocation9 + $0x1a]]
    %v501 = vstv %s500
    %v502 = vmul.f32 %v501, %v498
    %v503 = vmul.f32 %v501, %v499
    %v504 = vadd.f32 %v488, %v502
    %v505 = vadd.f32 %v489, %v503
    %s506 = sld [smem:[#allocation3 + $0x1b]]
    %s507 = sld [smem:[#allocation7 + $0x1b]]
    %v508 = vstv %s506
    %v509 = vmul.f32 %v508, %v72
    %v510 = vmul.f32 %v508, %v73
    %v511 = vstv %s507
    %v512 = vadd.f32 %v509, %v511
    %v513 = vadd.f32 %v510, %v511
    %v514 = vtanh.pop %v512
    %v515 = vtanh.pop %v513
    %s516 = sld [smem:[#allocation9 + $0x1b]]
    %v517 = vstv %s516
    %v518 = vmul.f32 %v517, %v514
    %v519 = vmul.f32 %v517, %v515
    %v520 = vadd.f32 %v504, %v518
    %v521 = vadd.f32 %v505, %v519
    %s522 = sld [smem:[#allocation3 + $0x1c]]
    %s523 = sld [smem:[#allocation7 + $0x1c]]
    %v524 = vstv %s522
    %v525 = vmul.f32 %v524, %v72
    %v526 = vmul.f32 %v524, %v73
    %v527 = vstv %s523
    %v528 = vadd.f32 %v525, %v527
    %v529 = vadd.f32 %v526, %v527
    %v530 = vtanh.pop %v528
    %v531 = vtanh.pop %v529
    %s532 = sld [smem:[#allocation9 + $0x1c]]
    %v533 = vstv %s532
    %v534 = vmul.f32 %v533, %v530
    %v535 = vmul.f32 %v533, %v531
    %v536 = vadd.f32 %v520, %v534
    %v537 = vadd.f32 %v521, %v535
    %s538 = sld [smem:[#allocation3 + $0x1d]]
    %s539 = sld [smem:[#allocation7 + $0x1d]]
    %v540 = vstv %s538
    %v541 = vmul.f32 %v540, %v72
    %v542 = vmul.f32 %v540, %v73
    %v543 = vstv %s539
    %v544 = vadd.f32 %v541, %v543
    %v545 = vadd.f32 %v542, %v543
    %v546 = vtanh.pop %v544
    %v547 = vtanh.pop %v545
    %s548 = sld [smem:[#allocation9 + $0x1d]]
    %v549 = vstv %s548
    %v550 = vmul.f32 %v549, %v546
    %v551 = vmul.f32 %v549, %v547
    %v552 = vadd.f32 %v536, %v550
    %v553 = vadd.f32 %v537, %v551
    %s554 = sld [smem:[#allocation3 + $0x1e]]
    %s555 = sld [smem:[#allocation7 + $0x1e]]
    %v556 = vstv %s554
    %v557 = vmul.f32 %v556, %v72
    %v558 = vmul.f32 %v556, %v73
    %v559 = vstv %s555
    %v560 = vadd.f32 %v557, %v559
    %v561 = vadd.f32 %v558, %v559
    %v562 = vtanh.pop %v560
    %v563 = vtanh.pop %v561
    %s564 = sld [smem:[#allocation9 + $0x1e]]
    %v565 = vstv %s564
    %v566 = vmul.f32 %v565, %v562
    %v567 = vmul.f32 %v565, %v563
    %v568 = vadd.f32 %v552, %v566
    %v569 = vadd.f32 %v553, %v567
    %s570 = sld [smem:[#allocation3 + $0x1f]]
    %s571 = sld [smem:[#allocation7 + $0x1f]]
    %v572 = vstv %s570
    %v573 = vmul.f32 %v572, %v72
    %v574 = vmul.f32 %v572, %v73
    %v575 = vstv %s571
    %v576 = vadd.f32 %v573, %v575
    %v577 = vadd.f32 %v574, %v575
    %v578 = vtanh.pop %v576
    %v579 = vtanh.pop %v577
    %s580 = sld [smem:[#allocation9 + $0x1f]]
    %v581 = vstv %s580
    %v582 = vmul.f32 %v581, %v578
    %v583 = vmul.f32 %v581, %v579
    %v584 = vadd.f32 %v568, %v582
    %v585 = vadd.f32 %v569, %v583
    %s586 = sld [smem:[#allocation2]]
    %v587 = vstv %s586
    %v588 = vadd.f32 %v584, %v587
    %v589 = vadd.f32 %v585, %v587
    %v590 = vxor.u32 %v588, 2147483648
    %v591 = vxor.u32 %v589, 2147483648
    %v592 = vmul.f32 %v590, 1.442695
    %v593 = vpow.pop %v592
    %v594 = vmul.f32 %v591, 1.442695
    %v595 = vpow.pop %v594
    %v596 = vadd.f32 %v593, 1.0
    %v597 = vadd.f32 %v595, 1.0
    %v598 = vrcp.pop %v596
    %v599 = vmul.f32 1.0, %v598
    %v600 = vrcp.pop %v597
    %v601 = vmul.f32 1.0, %v600
    %602 = vst [vmem:[#allocation11] sm:$0xff] %v599
    %603 = vst [vmem:[#allocation11 + $0x8] sm:$0xff] %v601
    // Predicated region
    $region38: #{tpu_custom_call.1} parent=1 // pred_check
      _
    $region39: #{tpu_custom_call.1} parent=1 // pred_check_branch
      %605 = sbr.rel (0) target = $region41
    $region40: #{tpu_custom_call.1} parent=1 // pred_region
      %s607 = ssub.s32 256, 256
      %608 = vsyncadd [#allocation5], %s607
      %s609 = sshll.u32 [#allocation11], 4
      %s610 = int_to_ptr.vmem [resolvable:$true] %s609
      %615 = dma.vmem_to_hbm [thread:$0]  %s610, 256, %s5, [#allocation5], 128, 128, 8
    $region41: #{tpu_custom_call.1} parent=1 // pred_fallthru
      _
    // Predicated region
    $region42: #{tpu_custom_call.1} parent=1 // pred_check
      _
    $region43: #{tpu_custom_call.1} parent=1 // pred_check_branch
      %617 = sbr.rel (0) target = $region45
    $region44: #{tpu_custom_call.1} parent=1 // pred_region
      %618 = dma.done [#allocation5], 256
    $region45: #{tpu_custom_call.1} parent=1 // pred_fallthru
      _
    %619 = vsyncpa [#allocation4], 1
    %620 = vsyncpa [#allocation5], 1
    %621 = vsyncpa [#allocation6], 1
    %622 = vsyncpa [#allocation8], 1

</llo_original>
